<compile_context>
chip_gen: v5e
topology: v5e:2x2
jax: 0.10.0
libtpu: 0.0.40
codegen_flags: <defaults>
</compile_context>

<pallas_src>
import functools

import jax
import jax.numpy as jnp
from jax.experimental import pallas as pl
from jax.experimental.pallas import tpu as pltpu


def _round_up(x: int, m: int) -> int:
    return (x + m - 1) // m * m


def _cdiv(a: int, b: int) -> int:
    return (a + b - 1) // b


def _feature_align(d: int) -> int:
    # 128 lanes is the hard minimum; use 256 when the dim is big enough to fill
    # the 256x256 MXU on v6e/v7x.
    return 128 if d <= 128 else 256


def _vmem_capacity_bytes() -> int:
    try:
        return int(pltpu.get_tpu_info().vmem_capacity_bytes)
    except Exception:
        return 64 << 20          # conservative (v7x-sized) fallback


def _ffn_kernel(x_ref, w1_ref, b1_ref, w2_ref, b2_ref, o_ref, acc_ref, *, mm_dtype):
    # Grid: (row tiles [parallel], d_hid slices [arbitrary]).
    # x_ref : (TM, d_in_p)        row tile of the flattened input (residual)
    # w1_ref: (d_in_p, TK)        streamed slice of W1 (transposed vs torch .weight)
    # b1_ref: (1, TK)
    # w2_ref: (TK, d_in_p)        streamed slice of W2
    # b2_ref: (1, d_in_p)
    # o_ref : (TM, d_in_p)
    # acc_ref: (TM, d_in_p) f32   running output accumulator
    k = pl.program_id(1)
    x = x_ref[...]

    @pl.when(k == 0)
    def _():
        # Fold the residual and the second bias into the accumulator once.
        acc_ref[...] = x.astype(jnp.float32) + b2_ref[...].astype(jnp.float32)

    x_mm = x if mm_dtype is None else x.astype(mm_dtype)
    w1 = w1_ref[...] if mm_dtype is None else w1_ref[...].astype(mm_dtype)
    h = jnp.dot(x_mm, w1, preferred_element_type=jnp.float32)
    h = h + b1_ref[...].astype(jnp.float32)
    h = jnp.where(h > 0.0, h, 0.01 * h)                 # leaky_relu, slope 0.01

    w2 = w2_ref[...] if mm_dtype is None else w2_ref[...].astype(mm_dtype)
    acc_ref[...] += jnp.dot(h.astype(w2.dtype), w2,
                            preferred_element_type=jnp.float32)

    @pl.when(k == pl.num_programs(1) - 1)
    def _():
        o_ref[...] = acc_ref[...].astype(o_ref.dtype)


def prepare_ffn_params(w1, b1, w2, b2):
    """Pad FFN parameters to lane-dense shapes ONCE (hoist out of the per-call path).

    w1: (d_in, d_hid), b1: (d_hid,), w2: (d_hid, d_in), b2: (d_in,).
    Weights are the transpose of torch's nn.Linear.weight so the kernel does x @ W.
    Padding is exact: padded rows/cols and bias entries are zero.
    """
    d_in, d_hid = w1.shape
    assert w2.shape == (d_hid, d_in) and b1.shape == (d_hid,) and b2.shape == (d_in,)
    d_in_p = _round_up(d_in, _feature_align(d_in))
    d_hid_p = _round_up(d_hid, _feature_align(d_hid))
    if (d_in_p, d_hid_p) == (d_in, d_hid):
        return w1, b1.reshape(1, d_hid), w2, b2.reshape(1, d_in)
    w1_p = jnp.zeros((d_in_p, d_hid_p), w1.dtype).at[:d_in, :d_hid].set(w1)
    b1_p = jnp.zeros((1, d_hid_p), b1.dtype).at[0, :d_hid].set(b1)
    w2_p = jnp.zeros((d_hid_p, d_in_p), w2.dtype).at[:d_hid, :d_in].set(w2)
    b2_p = jnp.zeros((1, d_in_p), b2.dtype).at[0, :d_in].set(b2)
    return w1_p, b1_p, w2_p, b2_p


@functools.partial(jax.jit, static_argnames=("tile_m", "hid_slice", "matmul_dtype"))
def _ffn_call(x, w1_p, b1_p, w2_p, b2_p, *, tile_m, hid_slice, matmul_dtype):
    orig_shape = x.shape
    d_in = orig_shape[-1]
    d_in_p, d_hid_p = w1_p.shape
    x2d = x.reshape(-1, d_in)
    n = x2d.shape[0]

    x_isz = jnp.dtype(x.dtype).itemsize
    w_isz = jnp.dtype(w1_p.dtype).itemsize

    # ---- row tiling ----------------------------------------------------------
    row_align = 16 if x.dtype == jnp.bfloat16 else 8
    tile_m = _round_up(max(int(tile_m), row_align), row_align)
    n_al = _round_up(max(n, 1), row_align)
    tm = min(tile_m, n_al)

    # ---- d_hid slice selection (weight streaming) ----------------------------
    align_hid = 256 if (d_hid_p > 128 and d_hid_p % 256 == 0) else 128
    vmem_cap = _vmem_capacity_bytes()
    budget = int(vmem_cap * 0.8)

    def footprint(tm_, tk_):
        x_tile = tm_ * d_in_p * x_isz                       # input row tile
        o_tile = tm_ * d_in_p * x_isz                       # output row tile
        w_slice = (2 * d_in_p * tk_ + tk_ + d_in_p) * w_isz  # W1/W2/b1/b2 slices
        acc = tm_ * d_in_p * 4                              # f32 accumulator
        inter = tm_ * tk_ * 4 + tm_ * d_in_p * 4            # f32 intermediates
        return 2 * (x_tile + o_tile) + 2 * w_slice + acc + inter

    def best_tk(tm_):
        # Largest d_hid slice (dividing d_hid_p) whose footprint fits the budget.
        for units in range(d_hid_p // align_hid, 0, -1):
            cand = units * align_hid
            if d_hid_p % cand:
                continue
            if footprint(tm_, cand) <= budget:
                return cand
        return None

    if hid_slice is not None:
        req = min(_round_up(max(int(hid_slice), align_hid), align_hid), d_hid_p)
        tk = align_hid
        for units in range(req // align_hid, 0, -1):
            cand = units * align_hid
            if d_hid_p % cand == 0:
                tk = cand
                break
    else:
        tk = best_tk(tm)
        while tk is None and tm > row_align:
            # Last resort: shrink the row tile (keeps weight slices as large as
            # possible so weight re-reads stay above the compute roofline).
            tm = _round_up(max(tm // 2, row_align), row_align)
            tk = best_tk(tm)
        if tk is None:
            tk = align_hid       # best effort; vmem_limit below is chip-clamped

    grid_k = d_hid_p // tk

    # Give the row axis >= 2 steps when that is free (weights are NOT re-read per
    # row tile) so ("parallel",) can shard rows across both v7x TensorCores.
    grid_m = _cdiv(n_al, tm)
    if grid_m == 1 and grid_k == 1 and n_al >= 2 * row_align:
        tm = _round_up(_cdiv(n_al, 2), row_align)
        grid_m = _cdiv(n_al, tm)
    n_p = grid_m * tm

    # ---- activation padding (only when actually needed) ----------------------
    if n_p != n or d_in_p != d_in:
        x_p = jnp.zeros((n_p, d_in_p), x.dtype).at[:n, :d_in].set(x2d)
    else:
        x_p = x2d

    # ---- VMEM limit & cost estimate -------------------------------------------
    fp = footprint(tm, tk)
    vmem_limit = int(min(max(int(fp * 1.25) + (4 << 20), 32 << 20),
                         vmem_cap - (2 << 20)))

    weight_bytes = (2 * d_in_p * d_hid_p + d_in_p + d_hid_p) * w_isz
    weight_reads = grid_m if grid_k > 1 else 1   # streamed => re-read per row tile
    cost = pl.CostEstimate(
        flops=int(4 * n_p * d_in_p * d_hid_p),   # two matmuls, 2 flops per MAC
        transcendentals=0,
        bytes_accessed=int(weight_bytes * weight_reads + 2 * n_p * d_in_p * x_isz),
    )

    mm_dtype = None if matmul_dtype is None else jnp.dtype(matmul_dtype)
    kernel = functools.partial(_ffn_kernel, mm_dtype=mm_dtype)

    out = pl.pallas_call(
        kernel,
        out_shape=jax.ShapeDtypeStruct((n_p, d_in_p), x.dtype),
        grid_spec=pltpu.PrefetchScalarGridSpec(
            num_scalar_prefetch=0,
            grid=(grid_m, grid_k),
            in_specs=[
                pl.BlockSpec((tm, d_in_p), lambda i, k: (i, 0)),   # x row tile
                pl.BlockSpec((d_in_p, tk), lambda i, k: (0, k)),   # W1 slice
                pl.BlockSpec((1, tk), lambda i, k: (0, k)),        # b1 slice
                pl.BlockSpec((tk, d_in_p), lambda i, k: (k, 0)),   # W2 slice
                pl.BlockSpec((1, d_in_p), lambda i, k: (0, 0)),    # b2
            ],
            out_specs=pl.BlockSpec((tm, d_in_p), lambda i, k: (i, 0)),
            scratch_shapes=[pltpu.VMEM((tm, d_in_p), jnp.float32)],
        ),
        compiler_params=pltpu.CompilerParams(
            dimension_semantics=("parallel", "arbitrary"),
            vmem_limit_bytes=vmem_limit,
        ),
        cost_estimate=cost,
    )(x_p, w1_p, b1_p, w2_p, b2_p)

    return out[:n, :d_in].reshape(orig_shape)


def apply_positionwise_feed_forward(x, params, *, tile_m=512, hid_slice=None,
                                    matmul_dtype=None):
    """FFN forward with parameters already padded once by prepare_ffn_params()."""
    w1_p, b1_p, w2_p, b2_p = params
    md = None if matmul_dtype is None else jnp.dtype(matmul_dtype).name
    hs = None if hid_slice is None else int(hid_slice)
    return _ffn_call(x, w1_p, b1_p, w2_p, b2_p,
                     tile_m=int(tile_m), hid_slice=hs, matmul_dtype=md)


def positionwise_feed_forward(x, w1, b1, w2, b2, *, tile_m=512, hid_slice=None,
                              matmul_dtype=None):
    """Convenience wrapper (pads params per call; hoist prepare_ffn_params() for
    repeated calls with the same weights)."""
    params = prepare_ffn_params(w1, b1, w2, b2)
    return apply_positionwise_feed_forward(x, params, tile_m=tile_m,
                                           hid_slice=hid_slice,
                                           matmul_dtype=matmul_dtype)


def _init_linear(key, fan_in, fan_out, dtype=jnp.float32):
    """torch.nn.Linear-style init: U(-1/sqrt(fan_in), +1/sqrt(fan_in)).

    Returns (weight_T, bias) with weight_T of shape (fan_in, fan_out)."""
    kw, kb = jax.random.split(key)
    bound = 1.0 / (fan_in ** 0.5)
    w_t = jax.random.uniform(kw, (fan_in, fan_out), dtype, -bound, bound)
    b = jax.random.uniform(kb, (fan_out,), dtype, -bound, bound)
    return w_t, b


def _reference(x, w1, b1, w2, b2):
    hp = jax.lax.Precision.HIGHEST
    h = jnp.dot(x, w1, precision=hp) + b1
    h = jnp.where(h > 0, h, 0.01 * h)
    return jnp.dot(h, w2, precision=hp) + b2 + x


if __name__ == "__main__":
    key = jax.random.PRNGKey(0)
    k_x, k_l1, k_l2, k2_x, k2_l1, k2_l2 = jax.random.split(key, 6)

    # ---- small shapes matching the module ------------------------------------
    batch, seq, d_in, d_hid = 2, 8, 16, 32
    x = jax.random.normal(k_x, (batch, seq, d_in), jnp.float32)
    w1, b1 = _init_linear(k_l1, d_in, d_hid)     # w_1: d_in -> d_hid
    w2, b2 = _init_linear(k_l2, d_hid, d_in)     # w_2: d_hid -> d_in
    ref = _reference(x, w1, b1, w2, b2)

    # Hoisted-parameter path (weights padded once, resident in VMEM, 2-step row grid).
    params = prepare_ffn_params(w1, b1, w2, b2)
    out = jax.block_until_ready(apply_positionwise_feed_forward(x, params))
    assert out.shape == x.shape
    assert jnp.allclose(out, ref, atol=1e-5, rtol=1e-5), "mismatch (resident)"

    # Convenience wrapper + small row tile to exercise the multi-step row grid.
    out2 = jax.block_until_ready(
        positionwise_feed_forward(x, w1, b1, w2, b2, tile_m=8))
    assert jnp.allclose(out2, ref, atol=1e-5, rtol=1e-5), "mismatch (row tiled)"

    # ---- exercise the d_hid-streaming ("arbitrary") axis ----------------------
    d_in2, d_hid2 = 256, 512
    x2 = jax.random.normal(k2_x, (batch, seq, d_in2), jnp.float32)
    w1b, b1b = _init_linear(k2_l1, d_in2, d_hid2)
    w2b, b2b = _init_linear(k2_l2, d_hid2, d_in2)
    ref2 = _reference(x2, w1b, b1b, w2b, b2b)
    out3 = jax.block_until_ready(
        positionwise_feed_forward(x2, w1b, b1b, w2b, b2b, tile_m=8, hid_slice=256))
    assert jnp.allclose(out3, ref2, atol=1e-4, rtol=1e-4), "mismatch (streamed)"

    # Optional bf16-matmul path (f32 accumulate) — loose tolerance by design.
    out4 = jax.block_until_ready(
        positionwise_feed_forward(x, w1, b1, w2, b2, matmul_dtype="bfloat16"))
    assert jnp.allclose(out4, ref, atol=1e-1, rtol=1e-1), "mismatch (bf16 matmul)"

    print("KERNEL_OK")
</pallas_src>

<mosaic_0001>
module attributes {stable_mosaic.version = 11 : i64} {
  func.func @_ffn_kernel(%arg0: i32, %arg1: i32, %arg2: memref<8x128xf32, #tpu.memory_space<vmem>>, %arg3: memref<128x128xf32, #tpu.memory_space<vmem>>, %arg4: memref<1x128xf32, #tpu.memory_space<vmem>>, %arg5: memref<128x128xf32, #tpu.memory_space<vmem>>, %arg6: memref<1x128xf32, #tpu.memory_space<vmem>>, %arg7: memref<8x128xf32, #tpu.memory_space<vmem>>, %arg8: memref<8x128xf32, #tpu.memory_space<vmem>>) attributes {dimension_semantics = [#tpu.dimension_semantics<parallel>, #tpu.dimension_semantics<arbitrary>], iteration_bounds = array<i64: 2, 1>, scalar_prefetch = 0 : i64, scratch_operands = 1 : i64, tpu.core_type = #tpu.core_type<tc>, window_params = [{transform_indices = @transform_0, window_bounds = array<i64: 8, 128>}, {transform_indices = @transform_1, window_bounds = array<i64: 128, 128>}, {transform_indices = @transform_2, window_bounds = array<i64: 1, 128>}, {transform_indices = @transform_3, window_bounds = array<i64: 128, 128>}, {pipeline_mode = #tpu.pipeline_mode<synchronous>, transform_indices = @transform_4, window_bounds = array<i64: 1, 128>}, {transform_indices = @transform_5, window_bounds = array<i64: 8, 128>}]} {
    %c0 = arith.constant 0 : index
    %c0_0 = arith.constant 0 : index
    %0 = vector.load %arg2[%c0, %c0_0] : memref<8x128xf32, #tpu.memory_space<vmem>>, vector<8x128xf32>
    %c0_i32 = arith.constant 0 : i32
    %1 = arith.cmpi eq, %arg1, %c0_i32 : i32
    %2 = arith.extui %1 : i1 to i32
    %c0_i32_1 = arith.constant 0 : i32
    %3 = arith.cmpi ne, %2, %c0_i32_1 : i32
    scf.if %3 {
      %c0_17 = arith.constant 0 : index
      %c0_18 = arith.constant 0 : index
      %22 = vector.load %arg6[%c0_17, %c0_18] : memref<1x128xf32, #tpu.memory_space<vmem>>, vector<1x128xf32>
      %23 = vector.broadcast %22 : vector<1x128xf32> to vector<8x128xf32>
      %24 = arith.addf %0, %23 : vector<8x128xf32>
      %c0_19 = arith.constant 0 : index
      %c0_20 = arith.constant 0 : index
      %25 = vector.load %arg8[%c0_19, %c0_20] : memref<8x128xf32, #tpu.memory_space<vmem>>, vector<8x128xf32>
      tpu.vector_store %arg8[%c0_19, %c0_20], %24 {strides = array<i32>} : memref<8x128xf32, #tpu.memory_space<vmem>>, vector<8x128xf32>,
    } else {
    }
    %c0_2 = arith.constant 0 : index
    %c0_3 = arith.constant 0 : index
    %4 = vector.load %arg3[%c0_2, %c0_3] : memref<128x128xf32, #tpu.memory_space<vmem>>, vector<128x128xf32>
    %cst = arith.constant dense<0.000000e+00> : vector<8x128xf32>
    %5 = tpu.matmul %0, %4, %cst {dimension_numbers = #tpu.dot_dimension_numbers<[1], [0], [0], [1], [0, 0, 1, 1], [], []>} : vector<8x128xf32>, vector<128x128xf32>, vector<8x128xf32> -> vector<8x128xf32>
    %c0_4 = arith.constant 0 : index
    %c0_5 = arith.constant 0 : index
    %6 = vector.load %arg4[%c0_4, %c0_5] : memref<1x128xf32, #tpu.memory_space<vmem>>, vector<1x128xf32>
    %7 = vector.broadcast %6 : vector<1x128xf32> to vector<8x128xf32>
    %8 = arith.addf %5, %7 : vector<8x128xf32>
    %cst_6 = arith.constant 0.000000e+00 : f32
    %9 = vector.broadcast %cst_6 : f32 to vector<8x128xf32>
    %10 = arith.cmpf ogt, %8, %9 : vector<8x128xf32>
    %cst_7 = arith.constant 0.00999999977 : f32
    %11 = vector.broadcast %cst_7 : f32 to vector<8x128xf32>
    %12 = arith.mulf %11, %8 : vector<8x128xf32>
    %13 = arith.select %10, %8, %12 : vector<8x128xi1>, vector<8x128xf32>
    %c0_8 = arith.constant 0 : index
    %c0_9 = arith.constant 0 : index
    %14 = vector.load %arg5[%c0_8, %c0_9] : memref<128x128xf32, #tpu.memory_space<vmem>>, vector<128x128xf32>
    %c0_10 = arith.constant 0 : index
    %c0_11 = arith.constant 0 : index
    %15 = vector.load %arg8[%c0_10, %c0_11] : memref<8x128xf32, #tpu.memory_space<vmem>>, vector<8x128xf32>
    %cst_12 = arith.constant dense<0.000000e+00> : vector<8x128xf32>
    %16 = tpu.matmul %13, %14, %cst_12 {dimension_numbers = #tpu.dot_dimension_numbers<[1], [0], [0], [1], [0, 0, 1, 1], [], []>} : vector<8x128xf32>, vector<128x128xf32>, vector<8x128xf32> -> vector<8x128xf32>
    %17 = arith.addf %15, %16 : vector<8x128xf32>
    %c0_13 = arith.constant 0 : index
    %c0_14 = arith.constant 0 : index
    %18 = vector.load %arg8[%c0_13, %c0_14] : memref<8x128xf32, #tpu.memory_space<vmem>>, vector<8x128xf32>
    tpu.vector_store %arg8[%c0_13, %c0_14], %17 {strides = array<i32>} : memref<8x128xf32, #tpu.memory_space<vmem>>, vector<8x128xf32>,
    %c0_i32_15 = arith.constant 0 : i32
    %19 = arith.cmpi eq, %arg1, %c0_i32_15 : i32
    %20 = arith.extui %19 : i1 to i32
    %c0_i32_16 = arith.constant 0 : i32
    %21 = arith.cmpi ne, %20, %c0_i32_16 : i32
    scf.if %21 {
      %c0_17 = arith.constant 0 : index
      %c0_18 = arith.constant 0 : index
      %22 = vector.load %arg8[%c0_17, %c0_18] : memref<8x128xf32, #tpu.memory_space<vmem>>, vector<8x128xf32>
      %c0_19 = arith.constant 0 : index
      %c0_20 = arith.constant 0 : index
      %23 = vector.load %arg7[%c0_19, %c0_20] : memref<8x128xf32, #tpu.memory_space<vmem>>, vector<8x128xf32>
      tpu.vector_store %arg7[%c0_19, %c0_20], %22 {strides = array<i32>} : memref<8x128xf32, #tpu.memory_space<vmem>>, vector<8x128xf32>,
    } else {
    }
    return
  }
  func.func @transform_0(%arg0: i32, %arg1: i32) -> (i32, i32) {
    %c0_i32 = arith.constant 0 : i32
    %c0_i32_0 = arith.constant 0 : i32
    return %arg0, %c0_i32 : i32, i32
  }
  func.func @transform_1(%arg0: i32, %arg1: i32) -> (i32, i32) {
    %c0_i32 = arith.constant 0 : i32
    %c0_i32_0 = arith.constant 0 : i32
    return %c0_i32, %arg1 : i32, i32
  }
  func.func @transform_2(%arg0: i32, %arg1: i32) -> (i32, i32) {
    %c0_i32 = arith.constant 0 : i32
    %c0_i32_0 = arith.constant 0 : i32
    return %c0_i32, %arg1 : i32, i32
  }
  func.func @transform_3(%arg0: i32, %arg1: i32) -> (i32, i32) {
    %c0_i32 = arith.constant 0 : i32
    %c0_i32_0 = arith.constant 0 : i32
    return %arg1, %c0_i32 : i32, i32
  }
  func.func @transform_4(%arg0: i32, %arg1: i32) -> (i32, i32) {
    %c0_i32 = arith.constant 0 : i32
    %c0_i32_0 = arith.constant 0 : i32
    %c0_i32_1 = arith.constant 0 : i32
    return %c0_i32, %c0_i32_0 : i32, i32
  }
  func.func @transform_5(%arg0: i32, %arg1: i32) -> (i32, i32) {
    %c0_i32 = arith.constant 0 : i32
    %c0_i32_0 = arith.constant 0 : i32
    return %arg0, %c0_i32 : i32, i32
  }
}

</mosaic_0001>

<llo_original>
// kernel: _ffn_call.1
$region0: #{_ffn_call.1}
  #allocation0 [shape = 'u32[]', space=smem, size = 0x4, offset = 0x4, fixed_abs, tag = 'smem constant byte address 0x4 - core index']
  #allocation1 [shape = 'u32[72,128]{1,0:T(1,128)}', space=vmem, size = 0x9000, scoped, tag = 'internal scratch']
  #allocation2 [shape = 'f32[8,128]{1,0:T(8,128)}', space=vmem, size = 0x1000, scoped, tag = 'scratch operand']
  %s0 = inlined_call_operand.vmem [shape: f32[16,128], index: 0, kind: input, shape index: {}]
  %s1 = inlined_call_operand.hbm [shape: f32[128,128], index: 1, kind: input, shape index: {}]
  %s2 = inlined_call_operand.vmem [shape: f32[1,128], index: 2, kind: input, shape index: {}]
  %s3 = inlined_call_operand.hbm [shape: f32[128,128], index: 3, kind: input, shape index: {}]
  %s4 = inlined_call_operand.vmem [shape: f32[1,128], index: 4, kind: input, shape index: {}]
  %s5 = inlined_call_operand.vmem [shape: f32[16,128], index: 5, kind: output, shape index: {}]
  %s6 = sld [smem:[#allocation0]]
  $region69: #{_ffn_call.1} parent=0
    _
  %s8 = ssub.s32 1, %s6
  %s9 = scalar_select 0, %s8, %s6
  $region1: #{_ffn_call.1} parent=0
    #allocation3 [shape = 'u8[65536]{0}', space=vmem, size = 0x10000, scoped, tag = 'input window, operand 1, single buffered']
    #allocation4 [shape = 's32[2]{0}', space=sflag, size = 0x8, scoped, tag = 'scoped memory for _ffn_call.1']
    #allocation5 [shape = 'u8[65536]{0}', space=vmem, size = 0x10000, scoped, tag = 'input window, operand 3, single buffered']
    #allocation6 [shape = 's32[1]{0}', space=sflag, size = 0x4, scoped, tag = 'scoped memory for _ffn_call.1']
    %10 = vsyncpa [#allocation4], 0
    %11 = vsyncpa [#allocation6], 0
    loop: start=0, step=1, limit=4
    $region2: #{_ffn_call.1} parent=1 // loop_pre_header
      _
    $region3: #{_ffn_call.1} parent=1 // loop_header
      %s13 = sphi 0, %s17
      %p14 = scmp.ge.s32.totalorder %s13, 4
      %s20 = sphi 0, %s32
      %s21 = sphi 0, %s28
      %s22 = sphi 0, %s20
      %s23 = sphi 0, %s21
      %s24 = sphi 0, %s22
      %s25 = sphi 0, %s23
      %s35 = sphi 0, %s37
      %s38 = sphi 0, %s35
      %s39 = sphi 0, %s38
      %s55 = sphi 0, %s39
      %s61 = sphi 0, %s63
      %s64 = sphi 0, %s61
      %s65 = sphi 0, %s64
      %s81 = sphi 0, %s65
      %s87 = sphi 0, %s89
      %s90 = sphi 0, %s87
      %s91 = sphi 0, %s90
      %s107 = sphi 0, %s91
      %s113 = sphi 0, %s115
      %s116 = sphi 0, %s113
      %s117 = sphi 0, %s116
      %s133 = sphi 0, %s117
      %s137 = sphi 0, %s137
      %s139 = sphi 0, %s137
      %s140 = sphi 0, %s139
      %s154 = sphi 0, %s140
      %s160 = sphi 0, %s162
      %s163 = sphi 0, %s160
      %s164 = sphi 0, %s163
      %s180 = sphi 0, %s164
    $region4: #{_ffn_call.1} parent=1 // loop_header_branch
      %16 = sbr.rel (%p14) target = $region8
    $region5: #{_ffn_call.1} parent=1 // loop_body
      %s18 = ssub.s32 %s13, 1
      %s19 = ssub.s32 %s13, 2
      %s26 = sadd.s32 1, %s21
      %p27 = scmp.ge.s32.totalorder %s26, 1
      %s28 = scalar_select %p27, 0, %s26
      %s29 = sadd.s32 1, %s20
      %s30 = scalar_select %p27, %s29, %s20
      %p31 = scmp.ge.s32.totalorder %s30, 2
      %s32 = scalar_select %p31, 0, %s30
      %s33 = ssub.s32 %s20, %s32
      %p34 = scmp.eq.s32.totalorder %s33, 0
      %s36 = sadd.s32 %s35, 1
      %s37 = scalar_select %p34, %s35, %s36
      %p40 = pneg %p34
      %p41 = scmp.eq.s32.totalorder %s13, 1
      %p42 = por %p40, %p41
      %p43 = scmp.ne.s32.totalorder %s35, %s38
      %p44 = scmp.eq.s32.totalorder %s13, 0
      %p45 = por %p43, %p44
      %p46 = scmp.ne.s32.totalorder %s35, %s38
      %p47 = scmp.eq.s32.totalorder %s18, 1
      %p48 = por %p46, %p47
      %p49 = scmp.ne.s32.totalorder %s38, %s39
      %p50 = scmp.eq.s32.totalorder %s18, 0
      %p51 = por %p49, %p50
      %p52 = scmp.ne.s32.totalorder %s38, %s39
      %p53 = scmp.eq.s32.totalorder %s19, 1
      %p54 = por %p52, %p53
      %p56 = scmp.ne.s32.totalorder %s39, %s55
      %p57 = scmp.eq.s32.totalorder %s19, 0
      %p58 = por %p56, %p57
      %s59 = ssub.s32 %s21, %s28
      %p60 = scmp.eq.s32.totalorder %s59, 0
      %s62 = sadd.s32 %s61, 1
      %s63 = scalar_select %p60, %s61, %s62
      %p66 = pneg %p60
      %p67 = scmp.eq.s32.totalorder %s13, 1
      %p68 = por %p66, %p67
      %p69 = scmp.ne.s32.totalorder %s61, %s64
      %p70 = scmp.eq.s32.totalorder %s13, 0
      %p71 = por %p69, %p70
      %p72 = scmp.ne.s32.totalorder %s61, %s64
      %p73 = scmp.eq.s32.totalorder %s18, 1
      %p74 = por %p72, %p73
      %p75 = scmp.ne.s32.totalorder %s64, %s65
      %p76 = scmp.eq.s32.totalorder %s18, 0
      %p77 = por %p75, %p76
      %p78 = scmp.ne.s32.totalorder %s64, %s65
      %p79 = scmp.eq.s32.totalorder %s19, 1
      %p80 = por %p78, %p79
      %p82 = scmp.ne.s32.totalorder %s65, %s81
      %p83 = scmp.eq.s32.totalorder %s19, 0
      %p84 = por %p82, %p83
      %s85 = ssub.s32 %s21, %s28
      %p86 = scmp.eq.s32.totalorder %s85, 0
      %s88 = sadd.s32 %s87, 1
      %s89 = scalar_select %p86, %s87, %s88
      %p92 = pneg %p86
      %p93 = scmp.eq.s32.totalorder %s13, 1
      %p94 = por %p92, %p93
      %p95 = scmp.ne.s32.totalorder %s87, %s90
      %p96 = scmp.eq.s32.totalorder %s13, 0
      %p97 = por %p95, %p96
      %p98 = scmp.ne.s32.totalorder %s87, %s90
      %p99 = scmp.eq.s32.totalorder %s18, 1
      %p100 = por %p98, %p99
      %p101 = scmp.ne.s32.totalorder %s90, %s91
      %p102 = scmp.eq.s32.totalorder %s18, 0
      %p103 = por %p101, %p102
      %p104 = scmp.ne.s32.totalorder %s90, %s91
      %p105 = scmp.eq.s32.totalorder %s19, 1
      %p106 = por %p104, %p105
      %p108 = scmp.ne.s32.totalorder %s91, %s107
      %p109 = scmp.eq.s32.totalorder %s19, 0
      %p110 = por %p108, %p109
      %s111 = ssub.s32 %s21, %s28
      %p112 = scmp.eq.s32.totalorder %s111, 0
      %s114 = sadd.s32 %s113, 1
      %s115 = scalar_select %p112, %s113, %s114
      %p118 = pneg %p112
      %p119 = scmp.eq.s32.totalorder %s13, 1
      %p120 = por %p118, %p119
      %p121 = scmp.ne.s32.totalorder %s113, %s116
      %p122 = scmp.eq.s32.totalorder %s13, 0
      %p123 = por %p121, %p122
      %p124 = scmp.ne.s32.totalorder %s113, %s116
      %p125 = scmp.eq.s32.totalorder %s18, 1
      %p126 = por %p124, %p125
      %p127 = scmp.ne.s32.totalorder %s116, %s117
      %p128 = scmp.eq.s32.totalorder %s18, 0
      %p129 = por %p127, %p128
      %p130 = scmp.ne.s32.totalorder %s116, %s117
      %p131 = scmp.eq.s32.totalorder %s19, 1
      %p132 = por %p130, %p131
      %p134 = scmp.ne.s32.totalorder %s117, %s133
      %p135 = scmp.eq.s32.totalorder %s19, 0
      %p136 = por %p134, %p135
      %s138 = sadd.s32 %s137, 1
      %p141 = scmp.eq.s32.totalorder %s13, 1
      %p142 = scmp.ne.s32.totalorder %s137, %s139
      %p143 = scmp.eq.s32.totalorder %s13, 0
      %p144 = por %p142, %p143
      %p145 = scmp.ne.s32.totalorder %s137, %s139
      %p146 = scmp.eq.s32.totalorder %s18, 1
      %p147 = por %p145, %p146
      %p148 = scmp.ne.s32.totalorder %s139, %s140
      %p149 = scmp.eq.s32.totalorder %s18, 0
      %p150 = por %p148, %p149
      %p151 = scmp.ne.s32.totalorder %s139, %s140
      %p152 = scmp.eq.s32.totalorder %s19, 1
      %p153 = por %p151, %p152
      %p155 = scmp.ne.s32.totalorder %s140, %s154
      %p156 = scmp.eq.s32.totalorder %s19, 0
      %p157 = por %p155, %p156
      %s158 = ssub.s32 %s20, %s32
      %p159 = scmp.eq.s32.totalorder %s158, 0
      %s161 = sadd.s32 %s160, 1
      %s162 = scalar_select %p159, %s160, %s161
      %p165 = pneg %p159
      %p166 = scmp.eq.s32.totalorder %s13, 1
      %p167 = por %p165, %p166
      %p168 = scmp.ne.s32.totalorder %s160, %s163
      %p169 = scmp.eq.s32.totalorder %s13, 0
      %p170 = por %p168, %p169
      %p171 = scmp.ne.s32.totalorder %s160, %s163
      %p172 = scmp.eq.s32.totalorder %s18, 1
      %p173 = por %p171, %p172
      %p174 = scmp.ne.s32.totalorder %s163, %s164
      %p175 = scmp.eq.s32.totalorder %s18, 0
      %p176 = por %p174, %p175
      %p177 = scmp.ne.s32.totalorder %s163, %s164
      %p178 = scmp.eq.s32.totalorder %s19, 1
      %p179 = por %p177, %p178
      %p181 = scmp.ne.s32.totalorder %s164, %s180
      %p182 = scmp.eq.s32.totalorder %s19, 0
      %p183 = por %p181, %p182
      %p184 = scmp.le.s32.totalorder 1, %s13
      %p185 = scmp.lt.s32.totalorder %s13, 3
      %p186 = pnand %p184, %p185
      %p187 = pneg %p186
      // Predicated region
      $region9: #{_ffn_call.1} parent=5 // pred_check
        _
      $region10: #{_ffn_call.1} parent=5 // pred_check_branch
        %189 = sbr.rel (%p186) target = $region12
      $region11: #{_ffn_call.1} parent=5 // pred_region
        %s190 = ssub.s32 %s13, 1
        // Predicated region
        $region13: #{_ffn_call.1} parent=11 // pred_check
          %p191 = pneg %p77
        $region14: #{_ffn_call.1} parent=11 // pred_check_branch
          %193 = sbr.rel (%p191) target = $region16
        $region15: #{_ffn_call.1} parent=11 // pred_region
          %195 = vsyncadd [#allocation4], 0
          %s196 = smul.addr %s23, 8
          %s197 = scalar_lea.hbm %s1, %s196
          %s198 = sshll.u32 %s197, 4
          %s199 = int_to_ptr.hbm [resolvable:$true] %s198
          %s200 = sshll.u32 [#allocation3], 4
          %s201 = int_to_ptr.vmem [resolvable:$true] %s200
          %206 = dma.hbm_to_vmem [thread:$0]  %s199, 2048, %s201, [#allocation4], 128, 128, 8
        $region16: #{_ffn_call.1} parent=11 // pred_fallthru
          _
        // Predicated region
        $region17: #{_ffn_call.1} parent=11 // pred_check
          %p207 = pneg %p103
        $region18: #{_ffn_call.1} parent=11 // pred_check_branch
          %209 = sbr.rel (%p207) target = $region20
        $region19: #{_ffn_call.1} parent=11 // pred_region
          %p210 = scmp.lt.s32.totalorder %s23, 0
          %s211 = scalar_select %p210, %s23, 0
          %s212 = scalar_lea.vmem %s2, %s211
        $region20: #{_ffn_call.1} parent=11 // pred_fallthru
          _
        // Predicated region
        $region21: #{_ffn_call.1} parent=11 // pred_check
          %p213 = pneg %p129
        $region22: #{_ffn_call.1} parent=11 // pred_check_branch
          %215 = sbr.rel (%p213) target = $region24
        $region23: #{_ffn_call.1} parent=11 // pred_region
          %s216 = smul.u32 16, %s23
          %218 = vsyncadd [#allocation6], 0
          %s219 = smul.addr %s216, 8
          %s220 = scalar_lea.hbm %s3, %s219
          %s221 = sshll.u32 %s220, 4
          %s222 = int_to_ptr.hbm [resolvable:$true] %s221
          %s223 = sshll.u32 [#allocation5], 4
          %s224 = int_to_ptr.vmem [resolvable:$true] %s223
          %229 = dma.hbm_to_vmem [thread:$0]  %s222, 2048, %s224, [#allocation6], 128, 128, 8
        $region24: #{_ffn_call.1} parent=11 // pred_fallthru
          _
        // Predicated region
        $region25: #{_ffn_call.1} parent=11 // pred_check
          %p230 = pneg %p150
        $region26: #{_ffn_call.1} parent=11 // pred_check_branch
          %232 = sbr.rel (%p230) target = $region28
        $region27: #{_ffn_call.1} parent=11 // pred_region
          _
        $region28: #{_ffn_call.1} parent=11 // pred_fallthru
          _
      $region12: #{_ffn_call.1} parent=5 // pred_fallthru
        _
      %p233 = scmp.lt.s32.totalorder %s13, 2
      // Predicated region
      $region29: #{_ffn_call.1} parent=5 // pred_check
        %p234 = pneg %p233
      $region30: #{_ffn_call.1} parent=5 // pred_check_branch
        %236 = sbr.rel (%p234) target = $region32
      $region31: #{_ffn_call.1} parent=5 // pred_region
        // Predicated region
        $region33: #{_ffn_call.1} parent=31 // pred_check
          %p237 = pneg %p45
        $region34: #{_ffn_call.1} parent=31 // pred_check_branch
          %239 = sbr.rel (%p237) target = $region36
        $region35: #{_ffn_call.1} parent=31 // pred_region
          %p240 = scmp.lt.s32.totalorder %s20, 1
          %s241 = scalar_select %p240, %s20, 1
          %s242 = smul.addr %s241, 8
          %s243 = scalar_lea.vmem %s0, %s242
        $region36: #{_ffn_call.1} parent=31 // pred_fallthru
          _
      $region32: #{_ffn_call.1} parent=5 // pred_fallthru
        _
      %p244 = scmp.le.s32.totalorder 1, %s13
      %p245 = scmp.lt.s32.totalorder %s13, 3
      %p246 = pnand %p244, %p245
      %p247 = pneg %p246
      // Predicated region
      $region37: #{_ffn_call.1} parent=5 // pred_check
        _
      $region38: #{_ffn_call.1} parent=5 // pred_check_branch
        %249 = sbr.rel (%p246) target = $region40
      $region39: #{_ffn_call.1} parent=5 // pred_region
        %s250 = ssub.s32 %s13, 1
        // Predicated region
        $region41: #{_ffn_call.1} parent=39 // pred_check
          %p251 = pneg %p77
        $region42: #{_ffn_call.1} parent=39 // pred_check_branch
          %253 = sbr.rel (%p251) target = $region44
        $region43: #{_ffn_call.1} parent=39 // pred_region
          %255 = dma.done [#allocation4], 2048
        $region44: #{_ffn_call.1} parent=39 // pred_fallthru
          _
        // Predicated region
        $region45: #{_ffn_call.1} parent=39 // pred_check
          %p256 = pneg %p129
        $region46: #{_ffn_call.1} parent=39 // pred_check_branch
          %258 = sbr.rel (%p256) target = $region48
        $region47: #{_ffn_call.1} parent=39 // pred_region
          %260 = dma.done [#allocation6], 2048
        $region48: #{_ffn_call.1} parent=39 // pred_fallthru
          _
        %p261 = scmp.lt.s32.totalorder %s22, 1
        %s262 = scalar_select %p261, %s22, 1
        %s263 = smul.addr %s262, 8
        %s264 = scalar_lea.vmem %s0, %s263
        %p265 = pneg %p51
        %p266 = pneg %p48
        %p267 = pneg %p77
        %p268 = pneg %p74
        %p269 = scmp.lt.s32.totalorder %s23, 0
        %s270 = scalar_select %p269, %s23, 0
        %s271 = scalar_lea.vmem %s2, %s270
        %p272 = pneg %p103
        %p273 = pneg %p100
        %p274 = pneg %p129
        %p275 = pneg %p126
        %p276 = pneg %p150
        %p277 = pneg %p147
        %p278 = pneg %p176
        %p279 = pneg %p173
        %p280 = scmp.lt.s32.totalorder %s22, 1
        %s281 = scalar_select %p280, %s22, 1
        %s282 = smul.addr %s281, 8
        %s283 = scalar_lea.vmem %s5, %s282
        %p284 = scmp.lt.s32.totalorder %s22, 1
        %s285 = scalar_select %p284, %s22, 1
        %s286 = smul.addr %s285, 8
        %s287 = scalar_lea.vmem %s0, %s286
        %p288 = scmp.lt.s32.totalorder %s23, 0
        %s289 = scalar_select %p288, %s23, 0
        %s290 = scalar_lea.vmem %s2, %s289
        %s291 = smul.u32 16, %s23
        %p292 = scmp.lt.s32.totalorder %s22, 1
        %s293 = scalar_select %p292, %s22, 1
        %s294 = smul.addr %s293, 8
        %s295 = scalar_lea.vmem %s5, %s294
        %v296 = vld [vmem:[%s287] sm:$0xff]
        %p297 = scmp.eq.s32.totalorder %s23, 0
        // Predicated region
        $region49: #{_ffn_call.1} parent=39 // pred_check
          %p298 = pneg %p297
        $region50: #{_ffn_call.1} parent=39 // pred_check_branch
          %300 = sbr.rel (%p298) target = $region52
        $region51: #{_ffn_call.1} parent=39 // pred_region
          %v301 = vld [vmem:[%s4] sm:$0x1]
          %v303 = vperm.slane %v301, 0
          %v305 = vadd.f32 %v296, %v303
          %306 = vst [vmem:[#allocation2] sm:$0xff] %v305
        $region52: #{_ffn_call.1} parent=39 // pred_fallthru
          _
        %v307 = vld [vmem:[#allocation3] sm:$0xff]
        %v308 = vld [vmem:[#allocation3 + $0x8] sm:$0xff]
        %v309 = vld [vmem:[#allocation3 + $0x10] sm:$0xff]
        %v310 = vld [vmem:[#allocation3 + $0x18] sm:$0xff]
        %v311 = vld [vmem:[#allocation3 + $0x20] sm:$0xff]
        %v312 = vld [vmem:[#allocation3 + $0x28] sm:$0xff]
        %v313 = vld [vmem:[#allocation3 + $0x30] sm:$0xff]
        %v314 = vld [vmem:[#allocation3 + $0x38] sm:$0xff]
        %v315 = vld [vmem:[#allocation3 + $0x40] sm:$0xff]
        %v316 = vld [vmem:[#allocation3 + $0x48] sm:$0xff]
        %v317 = vld [vmem:[#allocation3 + $0x50] sm:$0xff]
        %v318 = vld [vmem:[#allocation3 + $0x58] sm:$0xff]
        %v319 = vld [vmem:[#allocation3 + $0x60] sm:$0xff]
        %v320 = vld [vmem:[#allocation3 + $0x68] sm:$0xff]
        %v321 = vld [vmem:[#allocation3 + $0x70] sm:$0xff]
        %v322 = vld [vmem:[#allocation3 + $0x78] sm:$0xff]
        %v323 = vld [vmem:[%s290] sm:$0x1]
        %v325 = vperm.slane %v323, 0
        %327 = vmatpush.msra.mxu0 %v322
        %328 = vmatpush.msra.mxu0 %v321
        %329 = vmatpush.msra.mxu0 %v320
        %330 = vmatpush.msra.mxu0 %v319
        %331 = vmatpush.msra.mxu0 %v318
        %332 = vmatpush.msra.mxu0 %v317
        %333 = vmatpush.msra.mxu0 %v316
        %334 = vmatpush.msra.mxu0 %v315
        %335 = vmatpush.msra.mxu0 %v314
        %336 = vmatpush.msra.mxu0 %v313
        %337 = vmatpush.msra.mxu0 %v312
        %338 = vmatpush.msra.mxu0 %v311
        %339 = vmatpush.msra.mxu0 %v310
        %340 = vmatpush.msra.mxu0 %v309
        %341 = vmatpush.msra.mxu0 %v308
        %342 = vmatpush.msra.mxu0 %v307
        %343 = vmatmul.f32.gmra.mxu0 %v296
        %v344 = vpop.f32.mrf.mxu0
        %v345 = vadd.f32 %v325, %v344
        %346 = vdwg.mxu0
        %vm347 = vcmp.gt.f32.partialorder %v345, 0.0
        %v348 = vmul.f32 %v345, 0.01
        %v349 = vsel %vm347, %v345, %v348
        %v350 = vld [vmem:[#allocation5] sm:$0xff]
        %v351 = vld [vmem:[#allocation5 + $0x8] sm:$0xff]
        %v352 = vld [vmem:[#allocation5 + $0x10] sm:$0xff]
        %v353 = vld [vmem:[#allocation5 + $0x18] sm:$0xff]
        %v354 = vld [vmem:[#allocation5 + $0x20] sm:$0xff]
        %v355 = vld [vmem:[#allocation5 + $0x28] sm:$0xff]
        %v356 = vld [vmem:[#allocation5 + $0x30] sm:$0xff]
        %v357 = vld [vmem:[#allocation5 + $0x38] sm:$0xff]
        %v358 = vld [vmem:[#allocation5 + $0x40] sm:$0xff]
        %v359 = vld [vmem:[#allocation5 + $0x48] sm:$0xff]
        %v360 = vld [vmem:[#allocation5 + $0x50] sm:$0xff]
        %v361 = vld [vmem:[#allocation5 + $0x58] sm:$0xff]
        %v362 = vld [vmem:[#allocation5 + $0x60] sm:$0xff]
        %v363 = vld [vmem:[#allocation5 + $0x68] sm:$0xff]
        %v364 = vld [vmem:[#allocation5 + $0x70] sm:$0xff]
        %v365 = vld [vmem:[#allocation5 + $0x78] sm:$0xff]
        %v366 = vld [vmem:[#allocation2] sm:$0xff]
        %367 = vmatpush.msra.mxu0 %v365
        %368 = vmatpush.msra.mxu0 %v364
        %369 = vmatpush.msra.mxu0 %v363
        %370 = vmatpush.msra.mxu0 %v362
        %371 = vmatpush.msra.mxu0 %v361
        %372 = vmatpush.msra.mxu0 %v360
        %373 = vmatpush.msra.mxu0 %v359
        %374 = vmatpush.msra.mxu0 %v358
        %375 = vmatpush.msra.mxu0 %v357
        %376 = vmatpush.msra.mxu0 %v356
        %377 = vmatpush.msra.mxu0 %v355
        %378 = vmatpush.msra.mxu0 %v354
        %379 = vmatpush.msra.mxu0 %v353
        %380 = vmatpush.msra.mxu0 %v352
        %381 = vmatpush.msra.mxu0 %v351
        %382 = vmatpush.msra.mxu0 %v350
        %383 = vmatmul.f32.gmra.mxu0 %v349
        %v384 = vpop.f32.mrf.mxu0
        %v385 = vadd.f32 0.0, %v384
        %386 = vdwg.mxu0
        %v387 = vadd.f32 %v366, %v385
        %388 = vst [vmem:[#allocation2] sm:$0xff] %v387
        // Predicated region
        $region53: #{_ffn_call.1} parent=39 // pred_check
          %p389 = pneg %p297
        $region54: #{_ffn_call.1} parent=39 // pred_check_branch
          %391 = sbr.rel (%p389) target = $region56
        $region55: #{_ffn_call.1} parent=39 // pred_region
          %v392 = vld [vmem:[#allocation2] sm:$0xff]
          %393 = vst [vmem:[%s295] sm:$0xff] %v392
        $region56: #{_ffn_call.1} parent=39 // pred_fallthru
          _
        %p394 = scmp.lt.s32.totalorder %s22, 1
        %s395 = scalar_select %p394, %s22, 1
        %s396 = smul.addr %s395, 8
        %s397 = scalar_lea.vmem %s5, %s396
        // Predicated region
        $region57: #{_ffn_call.1} parent=39 // pred_check
          %p398 = pneg %p173
        $region58: #{_ffn_call.1} parent=39 // pred_check_branch
          %400 = sbr.rel (%p398) target = $region60
        $region59: #{_ffn_call.1} parent=39 // pred_region
          _
        $region60: #{_ffn_call.1} parent=39 // pred_fallthru
          _
      $region40: #{_ffn_call.1} parent=5 // pred_fallthru
        _
      %p401 = scmp.le.s32.totalorder 2, %s13
      // Predicated region
      $region61: #{_ffn_call.1} parent=5 // pred_check
        %p402 = pneg %p401
      $region62: #{_ffn_call.1} parent=5 // pred_check_branch
        %404 = sbr.rel (%p402) target = $region64
      $region63: #{_ffn_call.1} parent=5 // pred_region
        %s405 = ssub.s32 %s13, 2
        // Predicated region
        $region65: #{_ffn_call.1} parent=63 // pred_check
          %p406 = pneg %p179
        $region66: #{_ffn_call.1} parent=63 // pred_check_branch
          %408 = sbr.rel (%p406) target = $region68
        $region67: #{_ffn_call.1} parent=63 // pred_region
          %p409 = scmp.lt.s32.totalorder %s24, 1
          %s410 = scalar_select %p409, %s24, 1
          %s411 = smul.addr %s410, 8
          %s412 = scalar_lea.vmem %s5, %s411
        $region68: #{_ffn_call.1} parent=63 // pred_fallthru
          _
      $region64: #{_ffn_call.1} parent=5 // pred_fallthru
        _
    $region6: #{_ffn_call.1} parent=1 // loop_footer
      %s17 = sadd.s32 1, %s13
    $region7: #{_ffn_call.1} parent=1 // loop_footer_branch
      %12 = sbr.rel target = $region3
    $region8: #{_ffn_call.1} parent=1 // loop_exit
      _
    %413 = vsyncpa [#allocation4], 1
    %s414 = scalar_lea.sflag [#allocation4], 1
    %415 = vsyncpa %s414, 1
    %416 = vsyncpa [#allocation6], 1

</llo_original>
